<compile_context>
chip_gen: v7x
topology: tpu7x:2x2x1
jax: 0.10.0
libtpu: 0.0.40
codegen_flags: <defaults>
</compile_context>

<pallas_src>
import jax
import jax.numpy as jnp
from jax.experimental import pallas as pl
from jax.experimental.pallas import tpu as pltpu

EPS = 1e-5
NEG_SLOPE = 0.01  # nn.LeakyReLU default

# Single-block design cap (estimated VMEM footprint), safe on all generations.
_VMEM_CAP_BYTES = 24 << 20


def _leaky_relu(x):
    # max(x, a*x) == LeakyReLU(x) for 0 < a < 1: one VALU op.
    return jnp.maximum(x, NEG_SLOPE * x)


def _batchnorm_train(h, gamma, beta):
    # nn.BatchNorm1d, training mode: per-batch mean, biased variance.
    mean = jnp.mean(h, axis=0, keepdims=True)
    diff = h - mean
    var = jnp.mean(diff * diff, axis=0, keepdims=True)
    return diff * jax.lax.rsqrt(var + EPS) * gamma + beta


# Packed-parameter slab layout: (8, 128) f32
#   row 0, lanes [0:8)   : g1   (BN1d(8) gamma)
#   row 1, lanes [0:8)   : be1  (BN1d(8) beta)
#   row 2, lanes [0:8)   : w2   (Linear(8,1) weight, as a row of 8)
#   row 3, lanes [0:10)  : w3   (Linear(1,10) weight row; lanes 10..127 zero)
#   row 4, lanes [0:10)  : b3   (Linear(1,10) bias;       lanes 10..127 zero)
# SMEM scalars: s[0] = g2 (BN1d(1) gamma), s[1] = be2 (BN1d(1) beta)
def mlp_kernel(x_ref, w1_ref, p_ref, s_ref, o_ref):
    x = x_ref[...]                                                    # (B, 784) bf16

    # Linear(784, 8) -- the only MXU contraction (bf16 operands, f32 acc).
    # Bias b1 dropped: exactly cancelled by training-mode BN mean subtraction.
    h = jnp.dot(x, w1_ref[...], preferred_element_type=jnp.float32)  # (B, 8) f32

    # Static views of the packed parameter slab (zero-cost views).
    g1 = p_ref[0:1, 0:8]       # (1, 8)
    be1 = p_ref[1:2, 0:8]      # (1, 8)
    w2r = p_ref[2:3, 0:8]      # (1, 8)
    w3r = p_ref[3:4, :]        # (1, 128) lane-dense (zeros beyond lane 9)
    b3r = p_ref[4:5, :]        # (1, 128)
    g2 = s_ref[0]              # scalar (SMEM)
    be2 = s_ref[1]             # scalar (SMEM)

    # BatchNorm1d(8) + LeakyReLU
    h = _leaky_relu(_batchnorm_train(h, g1, be1))                     # (B, 8)

    # Linear(8, 1): VPU multiply + lane reduce (no MXU); b2 dropped (dead under BN).
    h = jnp.sum(h * w2r, axis=-1, keepdims=True)                      # (B, 1)

    # BatchNorm1d(1) + LeakyReLU (scalar gamma/beta from SMEM)
    h = _leaky_relu(_batchnorm_train(h, g2, be2))                     # (B, 1)

    # Linear(1, 10) as a broadcast multiply-add; lanes 10..127 stay zero.
    o_ref[...] = h * w3r + b3r                                        # (B, 128)


def prepare_params(params):
    """One-time packing of parameters into kernel-ready form.

    Called ONCE at init (hoisted out of the forward path):
      * w1 pre-transposed (784, 8) and cast to bf16 for the MXU,
      * all tiny VMEM params packed into a single (8, 128) f32 slab,
      * the two true scalars (g2, be2) packed into a (2,) f32 SMEM block.
    b1 / b2 are intentionally not packed (exactly cancelled by training BN).
    """
    (w1, _b1, g1, be1, w2, _b2, g2, be2, w3, b3) = params

    w1_bf16 = w1.astype(jnp.bfloat16)                  # (784, 8)

    slab = jnp.zeros((8, 128), jnp.float32)
    slab = slab.at[0, :8].set(g1.reshape(-1))
    slab = slab.at[1, :8].set(be1.reshape(-1))
    slab = slab.at[2, :8].set(w2.reshape(-1))          # Linear(8,1) weight row
    slab = slab.at[3, :10].set(w3.reshape(-1))         # Linear(1,10) weight row
    slab = slab.at[4, :10].set(b3.reshape(-1))         # Linear(1,10) bias row

    scalars = jnp.stack(
        [g2.reshape(-1)[0], be2.reshape(-1)[0]]).astype(jnp.float32)  # (2,)

    return w1_bf16, slab, scalars


def _round_up(n, m):
    return ((n + m - 1) // m) * m


def _vmem_bytes_estimate(batch):
    # bf16 x: rows pad to 16 (bf16 sublane packing), lanes 784 -> 896
    x_b = _round_up(batch, 16) * _round_up(784, 128) * 2
    w1_b = _round_up(784, 16) * 128 * 2                # bf16, lanes 8 -> 128
    slab_b = 8 * 128 * 4
    out_b = _round_up(batch, 8) * 128 * 4
    return x_b + w1_b + slab_b + out_b


def model_9_forward(x_nchw, prepared):
    """Fused forward. `prepared` comes from prepare_params() (hoisted)."""
    w1_bf16, slab, scalars = prepared
    B = x_nchw.shape[0]

    # Single-block design: whole problem resident in VMEM. Guard the ceiling
    # (v7x has 64 MiB physical VMEM; keep well under the 32 MiB scoped default).
    assert _vmem_bytes_estimate(B) < _VMEM_CAP_BYTES, (
        "Batch too large for the single-block kernel; use the tiled variant.")

    # Flatten NCHW -> (B, 784); bf16 for the MXU contraction only.
    x = x_nchw.reshape(B, -1).astype(jnp.bfloat16)

    full_spec = lambda a: pl.BlockSpec(a.shape, lambda: tuple(0 for _ in a.shape))

    cost = pl.CostEstimate(
        flops=2 * B * 784 * 8 + 2 * B * 8 + 2 * B * 10,
        transcendentals=2,                              # two rsqrt (BN1, BN2)
        bytes_accessed=2 * (B * 784) + 2 * (784 * 8) + 4 * (8 * 128)
                       + 4 * 2 + 4 * (B * 128),
    )

    out_padded = pl.pallas_call(
        mlp_kernel,
        out_shape=jax.ShapeDtypeStruct((B, 128), jnp.float32),  # lane-dense
        grid=(),
        in_specs=[
            full_spec(x),
            full_spec(w1_bf16),
            full_spec(slab),
            pl.BlockSpec(memory_space=pltpu.MemorySpace.SMEM),   # (2,) scalars
        ],
        out_specs=pl.BlockSpec((B, 128), lambda: (0, 0)),
        compiler_params=pltpu.CompilerParams(vmem_limit_bytes=32 << 20),
        cost_estimate=cost,
    )(x, w1_bf16, slab, scalars)

    return out_padded[:, :10]


def init_params(key):
    """Deterministic init matching PyTorch default shapes.

    Linear weights stored transposed as (in, out); biases/BN params as (1, out)
    rows. b1/b2 are still generated (and used by the f32 reference) but the
    kernel drops them -- they are exactly cancelled by training-mode BatchNorm.
    """
    def linear(k, fan_in, fan_out):
        k1, k2 = jax.random.split(k)
        bound = 1.0 / jnp.sqrt(fan_in)
        w = jax.random.uniform(k1, (fan_in, fan_out), jnp.float32, -bound, bound)
        b = jax.random.uniform(k2, (1, fan_out), jnp.float32, -bound, bound)
        return w, b

    k1, k2, k3 = jax.random.split(key, 3)
    w1, b1 = linear(k1, 28 * 28, 8)
    w2, b2 = linear(k2, 8, 1)
    w3, b3 = linear(k3, 1, 10)
    # BatchNorm1d: gamma = 1, beta = 0 (PyTorch default init)
    g1, be1 = jnp.ones((1, 8), jnp.float32), jnp.zeros((1, 8), jnp.float32)
    g2, be2 = jnp.ones((1, 1), jnp.float32), jnp.zeros((1, 1), jnp.float32)
    return (w1, b1, g1, be1, w2, b2, g2, be2, w3, b3)


def _bn_ref(h, g, be):
    m = jnp.mean(h, axis=0, keepdims=True)
    v = jnp.mean((h - m) ** 2, axis=0, keepdims=True)
    return (h - m) / jnp.sqrt(v + EPS) * g + be


def reference_forward_f32(x_nchw, params):
    """Pure-JAX reference with the FULL PyTorch math (f32, biases included)."""
    (w1, b1, g1, be1, w2, b2, g2, be2, w3, b3) = params
    x = x_nchw.reshape(x_nchw.shape[0], -1).astype(jnp.float32)
    h = x @ w1 + b1
    h = _leaky_relu(_bn_ref(h, g1, be1))
    h = h @ w2 + b2
    h = _leaky_relu(_bn_ref(h, g2, be2))
    return h @ w3 + b3


def reference_forward_matched(x_nchw, params):
    """Reference matching the kernel's numerics (bf16 matmul operands,
    f32 accumulate, biases dropped before BN -- exact under training BN)."""
    (w1, _b1, g1, be1, w2, _b2, g2, be2, w3, b3) = params
    x = x_nchw.reshape(x_nchw.shape[0], -1).astype(jnp.bfloat16)
    h = jnp.dot(x, w1.astype(jnp.bfloat16), preferred_element_type=jnp.float32)
    h = _leaky_relu(_bn_ref(h, g1, be1))
    h = jnp.sum(h * w2.reshape(1, -1), axis=-1, keepdims=True)
    h = _leaky_relu(_bn_ref(h, g2, be2))
    return h * w3.reshape(1, -1) + b3.reshape(1, -1)


if __name__ == "__main__":
    key = jax.random.PRNGKey(0)
    k_param, k_x = jax.random.split(key)

    params = init_params(k_param)
    prepared = prepare_params(params)          # hoisted: packed ONCE at init

    # MNIST-like input, small batch: (B, C, H, W) = (8, 1, 28, 28)
    x = jax.random.normal(k_x, (8, 1, 28, 28), jnp.float32)

    fwd = jax.jit(model_9_forward)
    out = jax.block_until_ready(fwd(x, prepared))
    assert out.shape == (8, 10) and out.dtype == jnp.float32

    # Tight check against a reference with matched (bf16-matmul) numerics.
    ref_matched = reference_forward_matched(x, params)
    assert jnp.allclose(out, ref_matched, atol=1e-3, rtol=1e-3), (
        float(jnp.max(jnp.abs(out - ref_matched))))

    # Loose check against the full-f32 PyTorch math (bf16 matmul operands make
    # the 1e-4 tolerance of the previous revision inapplicable).
    ref_f32 = reference_forward_f32(x, params)
    assert jnp.allclose(out, ref_f32, atol=0.25, rtol=0.05), (
        float(jnp.max(jnp.abs(out - ref_f32))))

    print("KERNEL_OK")
</pallas_src>

<mosaic_0001>
module attributes {stable_mosaic.version = 11 : i64} {
  func.func @mlp_kernel(%arg0: memref<8x784xbf16, #tpu.memory_space<vmem>>, %arg1: memref<784x8xbf16, #tpu.memory_space<vmem>>, %arg2: memref<8x128xf32, #tpu.memory_space<vmem>>, %arg3: memref<2xf32, #tpu.memory_space<smem>>, %arg4: memref<8x128xf32, #tpu.memory_space<vmem>>) attributes {dimension_semantics = [], scalar_prefetch = 0 : i64, scratch_operands = 0 : i64, tpu.core_type = #tpu.core_type<tc>} {
    %c0 = arith.constant 0 : index
    %c0_0 = arith.constant 0 : index
    %0 = vector.load %arg0[%c0, %c0_0] : memref<8x784xbf16, #tpu.memory_space<vmem>>, vector<8x784xbf16>
    %c0_1 = arith.constant 0 : index
    %c0_2 = arith.constant 0 : index
    %1 = vector.load %arg1[%c0_1, %c0_2] : memref<784x8xbf16, #tpu.memory_space<vmem>>, vector<784x8xbf16>
    %cst = arith.constant dense<0.000000e+00> : vector<8x8xf32>
    %2 = tpu.matmul %0, %1, %cst {dimension_numbers = #tpu.dot_dimension_numbers<[1], [0], [0], [1], [0, 0, 1, 1], [], []>} : vector<8x784xbf16>, vector<784x8xbf16>, vector<8x8xf32> -> vector<8x8xf32>
    %c0_3 = arith.constant 0 : index
    %c0_4 = arith.constant 0 : index
    %3 = vector.load %arg2[%c0_3, %c0_4] : memref<8x128xf32, #tpu.memory_space<vmem>>, vector<1x8xf32>
    %c1 = arith.constant 1 : index
    %c0_5 = arith.constant 0 : index
    %4 = vector.load %arg2[%c1, %c0_5] : memref<8x128xf32, #tpu.memory_space<vmem>>, vector<1x8xf32>
    %c2 = arith.constant 2 : index
    %c0_6 = arith.constant 0 : index
    %5 = vector.load %arg2[%c2, %c0_6] : memref<8x128xf32, #tpu.memory_space<vmem>>, vector<1x8xf32>
    %c3 = arith.constant 3 : index
    %c0_7 = arith.constant 0 : index
    %6 = vector.load %arg2[%c3, %c0_7] : memref<8x128xf32, #tpu.memory_space<vmem>>, vector<1x128xf32>
    %c4 = arith.constant 4 : index
    %c0_8 = arith.constant 0 : index
    %7 = vector.load %arg2[%c4, %c0_8] : memref<8x128xf32, #tpu.memory_space<vmem>>, vector<1x128xf32>
    %c0_9 = arith.constant 0 : index
    %8 = memref.load %arg3[%c0_9] : memref<2xf32, #tpu.memory_space<smem>>
    %c1_10 = arith.constant 1 : index
    %9 = memref.load %arg3[%c1_10] : memref<2xf32, #tpu.memory_space<smem>>
    %cst_11 = arith.constant dense<0.000000e+00> : vector<8xf32>
    %10 = vector.multi_reduction <add>, %2, %cst_11 [0] : vector<8x8xf32> to vector<8xf32>
    %11 = vector.shape_cast %10 : vector<8xf32> to vector<1x8xf32>
    %cst_12 = arith.constant 8.000000e+00 : f32
    %12 = vector.broadcast %cst_12 : f32 to vector<1x8xf32>
    %13 = arith.divf %11, %12 : vector<1x8xf32>
    %14 = vector.broadcast %13 : vector<1x8xf32> to vector<8x8xf32>
    %15 = arith.subf %2, %14 : vector<8x8xf32>
    %16 = arith.mulf %15, %15 : vector<8x8xf32>
    %cst_13 = arith.constant dense<0.000000e+00> : vector<8xf32>
    %17 = vector.multi_reduction <add>, %16, %cst_13 [0] : vector<8x8xf32> to vector<8xf32>
    %18 = vector.shape_cast %17 : vector<8xf32> to vector<1x8xf32>
    %cst_14 = arith.constant 8.000000e+00 : f32
    %19 = vector.broadcast %cst_14 : f32 to vector<1x8xf32>
    %20 = arith.divf %18, %19 : vector<1x8xf32>
    %cst_15 = arith.constant 9.99999974E-6 : f32
    %21 = vector.broadcast %cst_15 : f32 to vector<1x8xf32>
    %22 = arith.addf %20, %21 : vector<1x8xf32>
    %23 = math.rsqrt %22 : vector<1x8xf32>
    %24 = vector.broadcast %23 : vector<1x8xf32> to vector<8x8xf32>
    %25 = arith.mulf %15, %24 : vector<8x8xf32>
    %26 = vector.broadcast %3 : vector<1x8xf32> to vector<8x8xf32>
    %27 = arith.mulf %25, %26 : vector<8x8xf32>
    %28 = vector.broadcast %4 : vector<1x8xf32> to vector<8x8xf32>
    %29 = arith.addf %27, %28 : vector<8x8xf32>
    %cst_16 = arith.constant 0.00999999977 : f32
    %30 = vector.broadcast %cst_16 : f32 to vector<8x8xf32>
    %31 = arith.mulf %30, %29 : vector<8x8xf32>
    %32 = arith.maximumf %29, %31 : vector<8x8xf32>
    %33 = vector.broadcast %5 : vector<1x8xf32> to vector<8x8xf32>
    %34 = arith.mulf %32, %33 : vector<8x8xf32>
    %cst_17 = arith.constant dense<0.000000e+00> : vector<8xf32>
    %35 = vector.multi_reduction <add>, %34, %cst_17 [1] : vector<8x8xf32> to vector<8xf32>
    %36 = vector.shape_cast %35 : vector<8xf32> to vector<8x1xf32>
    %cst_18 = arith.constant dense<0.000000e+00> : vector<1xf32>
    %37 = vector.multi_reduction <add>, %36, %cst_18 [0] : vector<8x1xf32> to vector<1xf32>
    %38 = vector.shape_cast %37 : vector<1xf32> to vector<1x1xf32>
    %cst_19 = arith.constant 8.000000e+00 : f32
    %39 = vector.broadcast %cst_19 : f32 to vector<1x1xf32>
    %40 = arith.divf %38, %39 : vector<1x1xf32>
    %41 = vector.broadcast %40 : vector<1x1xf32> to vector<8x1xf32>
    %42 = arith.subf %36, %41 : vector<8x1xf32>
    %43 = arith.mulf %42, %42 : vector<8x1xf32>
    %cst_20 = arith.constant dense<0.000000e+00> : vector<1xf32>
    %44 = vector.multi_reduction <add>, %43, %cst_20 [0] : vector<8x1xf32> to vector<1xf32>
    %45 = vector.shape_cast %44 : vector<1xf32> to vector<1x1xf32>
    %cst_21 = arith.constant 8.000000e+00 : f32
    %46 = vector.broadcast %cst_21 : f32 to vector<1x1xf32>
    %47 = arith.divf %45, %46 : vector<1x1xf32>
    %cst_22 = arith.constant 9.99999974E-6 : f32
    %48 = vector.broadcast %cst_22 : f32 to vector<1x1xf32>
    %49 = arith.addf %47, %48 : vector<1x1xf32>
    %50 = math.rsqrt %49 : vector<1x1xf32>
    %51 = vector.broadcast %50 : vector<1x1xf32> to vector<8x1xf32>
    %52 = arith.mulf %42, %51 : vector<8x1xf32>
    %53 = vector.broadcast %8 : f32 to vector<8x1xf32>
    %54 = arith.mulf %52, %53 : vector<8x1xf32>
    %55 = vector.broadcast %9 : f32 to vector<8x1xf32>
    %56 = arith.addf %54, %55 : vector<8x1xf32>
    %cst_23 = arith.constant 0.00999999977 : f32
    %57 = vector.broadcast %cst_23 : f32 to vector<8x1xf32>
    %58 = arith.mulf %57, %56 : vector<8x1xf32>
    %59 = arith.maximumf %56, %58 : vector<8x1xf32>
    %60 = vector.broadcast %59 : vector<8x1xf32> to vector<8x128xf32>
    %61 = vector.broadcast %6 : vector<1x128xf32> to vector<8x128xf32>
    %62 = arith.mulf %60, %61 : vector<8x128xf32>
    %63 = vector.broadcast %7 : vector<1x128xf32> to vector<8x128xf32>
    %64 = arith.addf %62, %63 : vector<8x128xf32>
    %c0_24 = arith.constant 0 : index
    %c0_25 = arith.constant 0 : index
    %65 = vector.load %arg4[%c0_24, %c0_25] : memref<8x128xf32, #tpu.memory_space<vmem>>, vector<8x128xf32>
    tpu.vector_store %arg4[%c0_24, %c0_25], %64 {strides = array<i32>} : memref<8x128xf32, #tpu.memory_space<vmem>>, vector<8x128xf32>,
    return
  }
}

</mosaic_0001>

<llo_original>
// kernel: model_9_forward.1
$region0: #{model_9_forward.1}
  #allocation0 [shape = 'u32[]', space=smem, size = 0x4, offset = 0x4, fixed_abs, tag = 'smem constant byte address 0x4 - core index']
  #allocation1 [shape = 'u32[144,128]{1,0:T(1,128)}', space=vmem, size = 0x12000, scoped, tag = 'internal scratch']
  %s0 = inlined_call_operand.vmem [shape: bf16[8,784], index: 0, kind: input, shape index: {}]
  %s1 = inlined_call_operand.vmem [shape: bf16[784,8], index: 1, kind: input, shape index: {}]
  %s2 = inlined_call_operand.vmem [shape: f32[8,128], index: 2, kind: input, shape index: {}]
  %s3 = inlined_call_operand.vmem [shape: f32[2], index: 3, kind: input, shape index: {}]
  %s4 = inlined_call_operand.hbm [shape: f32[8,128], index: 4, kind: output, shape index: {}]
  %s5 = sld [smem:[#allocation0]]
  $region30: #{model_9_forward.1} parent=0
    _
  %s7 = ssub.s32 1, %s5
  %s8 = scalar_select 0, %s7, %s5
  $region1: #{model_9_forward.1} parent=0
    #allocation2 [shape = 'u8[512]{0}', space=smem, size = 0x200, scoped, tag = 'input window, operand 3, single buffered']
    #allocation3 [shape = 's32[1]{0}', space=sflag, size = 0x4, scoped, tag = 'scoped memory for model_9_forward.1']
    #allocation4 [shape = 's32[1]{0}', space=sflag, size = 0x4, scoped, tag = 'scoped memory for model_9_forward.1']
    #allocation5 [shape = 'u8[4096]{0}', space=vmem, size = 0x1000, scoped, tag = 'output window, operand 0, single buffered']
    %9 = vsyncpa [#allocation4], 0
    %10 = vsyncpa [#allocation3], 0
    // Predicated region
    $region2: #{model_9_forward.1} parent=1 // pred_check
      _
    $region3: #{model_9_forward.1} parent=1 // pred_check_branch
      %12 = sbr.rel (0) target = $region5
    $region4: #{model_9_forward.1} parent=1 // pred_region
      _
    $region5: #{model_9_forward.1} parent=1 // pred_fallthru
      _
    // Predicated region
    $region6: #{model_9_forward.1} parent=1 // pred_check
      _
    $region7: #{model_9_forward.1} parent=1 // pred_check_branch
      %14 = sbr.rel (0) target = $region9
    $region8: #{model_9_forward.1} parent=1 // pred_region
      _
    $region9: #{model_9_forward.1} parent=1 // pred_fallthru
      _
    // Predicated region
    $region10: #{model_9_forward.1} parent=1 // pred_check
      _
    $region11: #{model_9_forward.1} parent=1 // pred_check_branch
      %16 = sbr.rel (0) target = $region13
    $region12: #{model_9_forward.1} parent=1 // pred_region
      _
    $region13: #{model_9_forward.1} parent=1 // pred_fallthru
      _
    // Predicated region
    $region14: #{model_9_forward.1} parent=1 // pred_check
      _
    $region15: #{model_9_forward.1} parent=1 // pred_check_branch
      %18 = sbr.rel (0) target = $region17
    $region16: #{model_9_forward.1} parent=1 // pred_region
      %s20 = ssub.s32 16, 16
      %21 = vsyncadd [#allocation4], %s20
      %s23 = sshll.u32 %s3, 4
      %s24 = int_to_ptr.vmem [resolvable:$true] %s23
      %26 = dma.vmem_to_smem %s24, 16, [#allocation2], [#allocation4]
    $region17: #{model_9_forward.1} parent=1 // pred_fallthru
      _
    // Predicated region
    $region18: #{model_9_forward.1} parent=1 // pred_check
      _
    $region19: #{model_9_forward.1} parent=1 // pred_check_branch
      %28 = sbr.rel (0) target = $region21
    $region20: #{model_9_forward.1} parent=1 // pred_region
      %29 = dma.done [#allocation4], 16
    $region21: #{model_9_forward.1} parent=1 // pred_fallthru
      _
    %30 = sfence
    %v32 = vld [vmem:[%s0] sm:$0xff]
    %v33 = vld [vmem:[%s0 + $0x8] sm:$0xff]
    %v34 = vld [vmem:[%s0 + $0x10] sm:$0xff]
    %v35 = vld [vmem:[%s0 + $0x18] sm:$0xf]
    %v36 = vld [vmem:[%s1] sm:$0xf]
    %v37 = vld [vmem:[%s1 + $0x4] sm:$0xf]
    %v38 = vld [vmem:[%s1 + $0x8] sm:$0xf]
    %v39 = vld [vmem:[%s1 + $0xc] sm:$0xf]
    %v40 = vld [vmem:[%s1 + $0x10] sm:$0xf]
    %v41 = vld [vmem:[%s1 + $0x14] sm:$0xf]
    %v42 = vld [vmem:[%s1 + $0x18] sm:$0xf]
    %v43 = vld [vmem:[%s1 + $0x1c] sm:$0xf]
    %v44 = vld [vmem:[%s1 + $0x20] sm:$0xf]
    %v45 = vld [vmem:[%s1 + $0x24] sm:$0xf]
    %v46 = vld [vmem:[%s1 + $0x28] sm:$0xf]
    %v47 = vld [vmem:[%s1 + $0x2c] sm:$0xf]
    %v48 = vld [vmem:[%s1 + $0x30] sm:$0xf]
    %v49 = vld [vmem:[%s1 + $0x34] sm:$0xf]
    %v50 = vld [vmem:[%s1 + $0x38] sm:$0xf]
    %v51 = vld [vmem:[%s1 + $0x3c] sm:$0xf]
    %v52 = vld [vmem:[%s1 + $0x40] sm:$0xf]
    %v53 = vld [vmem:[%s1 + $0x44] sm:$0xf]
    %v54 = vld [vmem:[%s1 + $0x48] sm:$0xf]
    %v55 = vld [vmem:[%s1 + $0x4c] sm:$0xf]
    %v56 = vld [vmem:[%s1 + $0x50] sm:$0xf]
    %v57 = vld [vmem:[%s1 + $0x54] sm:$0xf]
    %v58 = vld [vmem:[%s1 + $0x58] sm:$0xf]
    %v59 = vld [vmem:[%s1 + $0x5c] sm:$0xf]
    %v60 = vld [vmem:[%s1 + $0x60] sm:$0xf]
    %v61 = vld [vmem:[%s1 + $0x64] sm:$0xf]
    %v62 = vld [vmem:[%s1 + $0x68] sm:$0xf]
    %v63 = vld [vmem:[%s1 + $0x6c] sm:$0xf]
    %v64 = vld [vmem:[%s1 + $0x70] sm:$0xf]
    %v65 = vld [vmem:[%s1 + $0x74] sm:$0xf]
    %v66 = vld [vmem:[%s1 + $0x78] sm:$0xf]
    %v67 = vld [vmem:[%s1 + $0x7c] sm:$0xf]
    %v68 = vld [vmem:[%s1 + $0x80] sm:$0xf]
    %v69 = vld [vmem:[%s1 + $0x84] sm:$0xf]
    %v70 = vld [vmem:[%s1 + $0x88] sm:$0xf]
    %v71 = vld [vmem:[%s1 + $0x8c] sm:$0xf]
    %v72 = vld [vmem:[%s1 + $0x90] sm:$0xf]
    %v73 = vld [vmem:[%s1 + $0x94] sm:$0xf]
    %v74 = vld [vmem:[%s1 + $0x98] sm:$0xf]
    %v75 = vld [vmem:[%s1 + $0x9c] sm:$0xf]
    %v76 = vld [vmem:[%s1 + $0xa0] sm:$0xf]
    %v77 = vld [vmem:[%s1 + $0xa4] sm:$0xf]
    %v78 = vld [vmem:[%s1 + $0xa8] sm:$0xf]
    %v79 = vld [vmem:[%s1 + $0xac] sm:$0xf]
    %v80 = vld [vmem:[%s1 + $0xb0] sm:$0xf]
    %v81 = vld [vmem:[%s1 + $0xb4] sm:$0xf]
    %v82 = vld [vmem:[%s1 + $0xb8] sm:$0xf]
    %v83 = vld [vmem:[%s1 + $0xbc] sm:$0xf]
    %v84 = vld [vmem:[%s1 + $0xc0] sm:$0xf]
    %v85 = vld [vmem:[%s1 + $0xc4] sm:$0xf]
    %v86 = vld [vmem:[%s1 + $0xc8] sm:$0xf]
    %v87 = vld [vmem:[%s1 + $0xcc] sm:$0xf]
    %v88 = vld [vmem:[%s1 + $0xd0] sm:$0xf]
    %v89 = vld [vmem:[%s1 + $0xd4] sm:$0xf]
    %v90 = vld [vmem:[%s1 + $0xd8] sm:$0xf]
    %v91 = vld [vmem:[%s1 + $0xdc] sm:$0xf]
    %v92 = vld [vmem:[%s1 + $0xe0] sm:$0xf]
    %v93 = vld [vmem:[%s1 + $0xe4] sm:$0xf]
    %v94 = vld [vmem:[%s1 + $0xe8] sm:$0xf]
    %v95 = vld [vmem:[%s1 + $0xec] sm:$0xf]
    %v96 = vld [vmem:[%s1 + $0xf0] sm:$0xf]
    %v97 = vld [vmem:[%s1 + $0xf4] sm:$0xf]
    %v98 = vld [vmem:[%s1 + $0xf8] sm:$0xf]
    %v99 = vld [vmem:[%s1 + $0xfc] sm:$0xf]
    %v100 = vld [vmem:[%s1 + $0x100] sm:$0xf]
    %v101 = vld [vmem:[%s1 + $0x104] sm:$0xf]
    %v102 = vld [vmem:[%s1 + $0x108] sm:$0xf]
    %v103 = vld [vmem:[%s1 + $0x10c] sm:$0xf]
    %v104 = vld [vmem:[%s1 + $0x110] sm:$0xf]
    %v105 = vld [vmem:[%s1 + $0x114] sm:$0xf]
    %v106 = vld [vmem:[%s1 + $0x118] sm:$0xf]
    %v107 = vld [vmem:[%s1 + $0x11c] sm:$0xf]
    %v108 = vld [vmem:[%s1 + $0x120] sm:$0xf]
    %v109 = vld [vmem:[%s1 + $0x124] sm:$0xf]
    %v110 = vld [vmem:[%s1 + $0x128] sm:$0xf]
    %v111 = vld [vmem:[%s1 + $0x12c] sm:$0xf]
    %v112 = vld [vmem:[%s1 + $0x130] sm:$0xf]
    %v113 = vld [vmem:[%s1 + $0x134] sm:$0xf]
    %v114 = vld [vmem:[%s1 + $0x138] sm:$0xf]
    %v115 = vld [vmem:[%s1 + $0x13c] sm:$0xf]
    %v116 = vld [vmem:[%s1 + $0x140] sm:$0xf]
    %v117 = vld [vmem:[%s1 + $0x144] sm:$0xf]
    %v118 = vld [vmem:[%s1 + $0x148] sm:$0xf]
    %v119 = vld [vmem:[%s1 + $0x14c] sm:$0xf]
    %v120 = vld [vmem:[%s1 + $0x150] sm:$0xf]
    %v121 = vld [vmem:[%s1 + $0x154] sm:$0xf]
    %v122 = vld [vmem:[%s1 + $0x158] sm:$0xf]
    %v123 = vld [vmem:[%s1 + $0x15c] sm:$0xf]
    %v124 = vld [vmem:[%s1 + $0x160] sm:$0xf]
    %v125 = vld [vmem:[%s1 + $0x164] sm:$0xf]
    %v126 = vld [vmem:[%s1 + $0x168] sm:$0xf]
    %v127 = vld [vmem:[%s1 + $0x16c] sm:$0xf]
    %v128 = vld [vmem:[%s1 + $0x170] sm:$0xf]
    %v129 = vld [vmem:[%s1 + $0x174] sm:$0xf]
    %v130 = vld [vmem:[%s1 + $0x178] sm:$0xf]
    %v131 = vld [vmem:[%s1 + $0x17c] sm:$0xf]
    %v132 = vld [vmem:[%s1 + $0x180] sm:$0xf]
    %v133 = vld [vmem:[%s1 + $0x184] sm:$0xf]
    %v138 = vunpack.c.l.b16 %v32
    %v139 = vunpack.c.h.b16 %v32
    %v140 = vunpack.c.l.b16 %v33
    %v141 = vunpack.c.h.b16 %v33
    %v142 = vunpack.c.l.b16 %v34
    %v143 = vunpack.c.h.b16 %v34
    %v144 = vunpack.c.l.b16 %v35
    %v145 = vpack.c.b16 %v138, %v138
    %v146 = vpack.c.b16 %v139, %v139
    %v147 = vpack.c.b16 %v140, %v140
    %v148 = vpack.c.b16 %v141, %v141
    %v149 = vpack.c.b16 %v142, %v142
    %v150 = vpack.c.b16 %v143, %v143
    %v151 = vpack.c.b16 %v144, %v144
    %v256 = vunpack.c.l.b16 %v36
    %v257 = vunpack.c.l.b16 %v37
    %v258 = vunpack.c.l.b16 %v38
    %v259 = vunpack.c.l.b16 %v39
    %v260 = vunpack.c.l.b16 %v40
    %v261 = vunpack.c.l.b16 %v41
    %v262 = vunpack.c.l.b16 %v42
    %v263 = vunpack.c.l.b16 %v43
    %v264 = vunpack.c.l.b16 %v44
    %v265 = vunpack.c.l.b16 %v45
    %v266 = vunpack.c.l.b16 %v46
    %v267 = vunpack.c.l.b16 %v47
    %v268 = vunpack.c.l.b16 %v48
    %v269 = vunpack.c.l.b16 %v49
    %v270 = vunpack.c.l.b16 %v50
    %v271 = vunpack.c.l.b16 %v51
    %v272 = vunpack.c.l.b16 %v52
    %v273 = vunpack.c.l.b16 %v53
    %v274 = vunpack.c.l.b16 %v54
    %v275 = vunpack.c.l.b16 %v55
    %v276 = vunpack.c.l.b16 %v56
    %v277 = vunpack.c.l.b16 %v57
    %v278 = vunpack.c.l.b16 %v58
    %v279 = vunpack.c.l.b16 %v59
    %v280 = vunpack.c.l.b16 %v60
    %v281 = vunpack.c.l.b16 %v61
    %v282 = vunpack.c.l.b16 %v62
    %v283 = vunpack.c.l.b16 %v63
    %v284 = vunpack.c.l.b16 %v64
    %v285 = vunpack.c.l.b16 %v65
    %v286 = vunpack.c.l.b16 %v66
    %v287 = vunpack.c.l.b16 %v67
    %v288 = vunpack.c.l.b16 %v68
    %v289 = vunpack.c.l.b16 %v69
    %v290 = vunpack.c.l.b16 %v70
    %v291 = vunpack.c.l.b16 %v71
    %v292 = vunpack.c.l.b16 %v72
    %v293 = vunpack.c.l.b16 %v73
    %v294 = vunpack.c.l.b16 %v74
    %v295 = vunpack.c.l.b16 %v75
    %v296 = vunpack.c.l.b16 %v76
    %v297 = vunpack.c.l.b16 %v77
    %v298 = vunpack.c.l.b16 %v78
    %v299 = vunpack.c.l.b16 %v79
    %v300 = vunpack.c.l.b16 %v80
    %v301 = vunpack.c.l.b16 %v81
    %v302 = vunpack.c.l.b16 %v82
    %v303 = vunpack.c.l.b16 %v83
    %v304 = vunpack.c.l.b16 %v84
    %v305 = vunpack.c.l.b16 %v85
    %v306 = vunpack.c.l.b16 %v86
    %v307 = vunpack.c.l.b16 %v87
    %v308 = vunpack.c.l.b16 %v88
    %v309 = vunpack.c.l.b16 %v89
    %v310 = vunpack.c.l.b16 %v90
    %v311 = vunpack.c.l.b16 %v91
    %v312 = vunpack.c.l.b16 %v92
    %v313 = vunpack.c.l.b16 %v93
    %v314 = vunpack.c.l.b16 %v94
    %v315 = vunpack.c.l.b16 %v95
    %v316 = vunpack.c.l.b16 %v96
    %v317 = vunpack.c.l.b16 %v97
    %v318 = vunpack.c.l.b16 %v98
    %v319 = vunpack.c.l.b16 %v99
    %v320 = vunpack.c.l.b16 %v100
    %v321 = vunpack.c.l.b16 %v101
    %v322 = vunpack.c.l.b16 %v102
    %v323 = vunpack.c.l.b16 %v103
    %v324 = vunpack.c.l.b16 %v104
    %v325 = vunpack.c.l.b16 %v105
    %v326 = vunpack.c.l.b16 %v106
    %v327 = vunpack.c.l.b16 %v107
    %v328 = vunpack.c.l.b16 %v108
    %v329 = vunpack.c.l.b16 %v109
    %v330 = vunpack.c.l.b16 %v110
    %v331 = vunpack.c.l.b16 %v111
    %v332 = vunpack.c.l.b16 %v112
    %v333 = vunpack.c.l.b16 %v113
    %v334 = vunpack.c.l.b16 %v114
    %v335 = vunpack.c.l.b16 %v115
    %v336 = vunpack.c.l.b16 %v116
    %v337 = vunpack.c.l.b16 %v117
    %v338 = vunpack.c.l.b16 %v118
    %v339 = vunpack.c.l.b16 %v119
    %v340 = vunpack.c.l.b16 %v120
    %v341 = vunpack.c.l.b16 %v121
    %v342 = vunpack.c.l.b16 %v122
    %v343 = vunpack.c.l.b16 %v123
    %v344 = vunpack.c.l.b16 %v124
    %v345 = vunpack.c.l.b16 %v125
    %v346 = vunpack.c.l.b16 %v126
    %v347 = vunpack.c.l.b16 %v127
    %v348 = vunpack.c.l.b16 %v128
    %v349 = vunpack.c.l.b16 %v129
    %v350 = vunpack.c.l.b16 %v130
    %v351 = vunpack.c.l.b16 %v131
    %v352 = vunpack.c.l.b16 %v132
    %v353 = vunpack.c.l.b16 %v133
    %v354 = vpack.c.b16 %v257, %v256
    %v355 = vpack.c.b16 %v259, %v258
    %v356 = vpack.c.b16 %v261, %v260
    %v357 = vpack.c.b16 %v263, %v262
    %v358 = vpack.c.b16 %v265, %v264
    %v359 = vpack.c.b16 %v267, %v266
    %v360 = vpack.c.b16 %v269, %v268
    %v361 = vpack.c.b16 %v271, %v270
    %v362 = vpack.c.b16 %v273, %v272
    %v363 = vpack.c.b16 %v275, %v274
    %v364 = vpack.c.b16 %v277, %v276
    %v365 = vpack.c.b16 %v279, %v278
    %v366 = vpack.c.b16 %v281, %v280
    %v367 = vpack.c.b16 %v283, %v282
    %v368 = vpack.c.b16 %v285, %v284
    %v369 = vpack.c.b16 %v287, %v286
    %v370 = vpack.c.b16 %v289, %v288
    %v371 = vpack.c.b16 %v291, %v290
    %v372 = vpack.c.b16 %v293, %v292
    %v373 = vpack.c.b16 %v295, %v294
    %v374 = vpack.c.b16 %v297, %v296
    %v375 = vpack.c.b16 %v299, %v298
    %v376 = vpack.c.b16 %v301, %v300
    %v377 = vpack.c.b16 %v303, %v302
    %v378 = vpack.c.b16 %v305, %v304
    %v379 = vpack.c.b16 %v307, %v306
    %v380 = vpack.c.b16 %v309, %v308
    %v381 = vpack.c.b16 %v311, %v310
    %v382 = vpack.c.b16 %v313, %v312
    %v383 = vpack.c.b16 %v315, %v314
    %v384 = vpack.c.b16 %v317, %v316
    %v385 = vpack.c.b16 %v319, %v318
    %v386 = vpack.c.b16 %v321, %v320
    %v387 = vpack.c.b16 %v323, %v322
    %v388 = vpack.c.b16 %v325, %v324
    %v389 = vpack.c.b16 %v327, %v326
    %v390 = vpack.c.b16 %v329, %v328
    %v391 = vpack.c.b16 %v331, %v330
    %v392 = vpack.c.b16 %v333, %v332
    %v393 = vpack.c.b16 %v335, %v334
    %v394 = vpack.c.b16 %v337, %v336
    %v395 = vpack.c.b16 %v339, %v338
    %v396 = vpack.c.b16 %v341, %v340
    %v397 = vpack.c.b16 %v343, %v342
    %v398 = vpack.c.b16 %v345, %v344
    %v399 = vpack.c.b16 %v347, %v346
    %v400 = vpack.c.b16 %v349, %v348
    %v401 = vpack.c.b16 %v351, %v350
    %v402 = vpack.c.b16 %v353, %v352
    %vm452 = vcmask 130048
    %v454 = vsel %vm452, %v151, 0
    %456 = vmatprep.subr.bf16.mxu0 0
    %457 = vmatpush1.bf16.msra.mxu0 %v354
    %458 = vmatprep.subr.bf16.mxu0 0
    %459 = vmatpush1.bf16.msra.mxu0 %v355
    %460 = vmatprep.subr.bf16.mxu0 0
    %461 = vmatpush1.bf16.msra.mxu0 %v356
    %462 = vmatprep.subr.bf16.mxu0 0
    %463 = vmatpush1.bf16.msra.mxu0 %v357
    %464 = vmatprep.subr.bf16.mxu0 0
    %465 = vmatpush1.bf16.msra.mxu0 %v358
    %466 = vmatprep.subr.bf16.mxu0 0
    %467 = vmatpush1.bf16.msra.mxu0 %v359
    %468 = vmatprep.subr.bf16.mxu0 0
    %469 = vmatpush1.bf16.msra.mxu0 %v360
    %470 = vmatprep.subr.bf16.mxu0 0
    %471 = vmatpush1.bf16.msra.mxu0 %v361
    %472 = vmatprep.subr.bf16.mxu0 0
    %473 = vmatpush1.bf16.msra.mxu0 %v362
    %474 = vmatprep.subr.bf16.mxu0 0
    %475 = vmatpush1.bf16.msra.mxu0 %v363
    %476 = vmatprep.subr.bf16.mxu0 0
    %477 = vmatpush1.bf16.msra.mxu0 %v364
    %478 = vmatprep.subr.bf16.mxu0 0
    %479 = vmatpush1.bf16.msra.mxu0 %v365
    %480 = vmatprep.subr.bf16.mxu0 0
    %481 = vmatpush1.bf16.msra.mxu0 %v366
    %482 = vmatprep.subr.bf16.mxu0 0
    %483 = vmatpush1.bf16.msra.mxu0 %v367
    %484 = vmatprep.subr.bf16.mxu0 0
    %485 = vmatpush1.bf16.msra.mxu0 %v368
    %486 = vmatprep.subr.bf16.mxu0 0
    %487 = vmatpush1.bf16.msra.mxu0 %v369
    %488 = vmatprep.mubr.bf16.mxu0 %v146
    %489 = vmatmul.mubr.bf16.gmra.mrb[0].mxu0 %v145
    %v490 = vpop.f32.mrb[0].mxu0
    %v491 = vadd.f32 0.0, %v490
    %v492 = vpop.f32.mrb[0].mxu0
    %v493 = vpop.f32.mrb[0].mxu0
    %v494 = vpop.f32.mrb[0].mxu0
    %495 = vdwg.mxu0
    %496 = vmatprep.subr.bf16.mxu0 0
    %497 = vmatpush1.bf16.msra.mxu0 %v370
    %498 = vmatprep.subr.bf16.mxu0 0
    %499 = vmatpush1.bf16.msra.mxu0 %v371
    %500 = vmatprep.subr.bf16.mxu0 0
    %501 = vmatpush1.bf16.msra.mxu0 %v372
    %502 = vmatprep.subr.bf16.mxu0 0
    %503 = vmatpush1.bf16.msra.mxu0 %v373
    %504 = vmatprep.subr.bf16.mxu0 0
    %505 = vmatpush1.bf16.msra.mxu0 %v374
    %506 = vmatprep.subr.bf16.mxu0 0
    %507 = vmatpush1.bf16.msra.mxu0 %v375
    %508 = vmatprep.subr.bf16.mxu0 0
    %509 = vmatpush1.bf16.msra.mxu0 %v376
    %510 = vmatprep.subr.bf16.mxu0 0
    %511 = vmatpush1.bf16.msra.mxu0 %v377
    %512 = vmatprep.subr.bf16.mxu0 0
    %513 = vmatpush1.bf16.msra.mxu0 %v378
    %514 = vmatprep.subr.bf16.mxu0 0
    %515 = vmatpush1.bf16.msra.mxu0 %v379
    %516 = vmatprep.subr.bf16.mxu0 0
    %517 = vmatpush1.bf16.msra.mxu0 %v380
    %518 = vmatprep.subr.bf16.mxu0 0
    %519 = vmatpush1.bf16.msra.mxu0 %v381
    %520 = vmatprep.subr.bf16.mxu0 0
    %521 = vmatpush1.bf16.msra.mxu0 %v382
    %522 = vmatprep.subr.bf16.mxu0 0
    %523 = vmatpush1.bf16.msra.mxu0 %v383
    %524 = vmatprep.subr.bf16.mxu0 0
    %525 = vmatpush1.bf16.msra.mxu0 %v384
    %526 = vmatprep.subr.bf16.mxu0 0
    %527 = vmatpush1.bf16.msra.mxu0 %v385
    %528 = vmatprep.mubr.bf16.mxu0 %v148
    %529 = vmatmul.mubr.bf16.gmra.mrb[0].mxu0 %v147
    %v530 = vpop.f32.mrb[0].mxu0
    %v531 = vadd.f32 %v491, %v530
    %v532 = vpop.f32.mrb[0].mxu0
    %v533 = vpop.f32.mrb[0].mxu0
    %v534 = vpop.f32.mrb[0].mxu0
    %535 = vdwg.mxu0
    %536 = vmatprep.subr.bf16.mxu0 0
    %537 = vmatpush1.bf16.msra.mxu0 %v386
    %538 = vmatprep.subr.bf16.mxu0 0
    %539 = vmatpush1.bf16.msra.mxu0 %v387
    %540 = vmatprep.subr.bf16.mxu0 0
    %541 = vmatpush1.bf16.msra.mxu0 %v388
    %542 = vmatprep.subr.bf16.mxu0 0
    %543 = vmatpush1.bf16.msra.mxu0 %v389
    %544 = vmatprep.subr.bf16.mxu0 0
    %545 = vmatpush1.bf16.msra.mxu0 %v390
    %546 = vmatprep.subr.bf16.mxu0 0
    %547 = vmatpush1.bf16.msra.mxu0 %v391
    %548 = vmatprep.subr.bf16.mxu0 0
    %549 = vmatpush1.bf16.msra.mxu0 %v392
    %550 = vmatprep.subr.bf16.mxu0 0
    %551 = vmatpush1.bf16.msra.mxu0 %v393
    %552 = vmatprep.subr.bf16.mxu0 0
    %553 = vmatpush1.bf16.msra.mxu0 %v394
    %554 = vmatprep.subr.bf16.mxu0 0
    %555 = vmatpush1.bf16.msra.mxu0 %v395
    %556 = vmatprep.subr.bf16.mxu0 0
    %557 = vmatpush1.bf16.msra.mxu0 %v396
    %558 = vmatprep.subr.bf16.mxu0 0
    %559 = vmatpush1.bf16.msra.mxu0 %v397
    %560 = vmatprep.subr.bf16.mxu0 0
    %561 = vmatpush1.bf16.msra.mxu0 %v398
    %562 = vmatprep.subr.bf16.mxu0 0
    %563 = vmatpush1.bf16.msra.mxu0 %v399
    %564 = vmatprep.subr.bf16.mxu0 0
    %565 = vmatpush1.bf16.msra.mxu0 %v400
    %566 = vmatprep.subr.bf16.mxu0 0
    %567 = vmatpush1.bf16.msra.mxu0 %v401
    %568 = vmatprep.mubr.bf16.mxu0 %v150
    %569 = vmatmul.mubr.bf16.gmra.mrb[0].mxu0 %v149
    %v570 = vpop.f32.mrb[0].mxu0
    %v571 = vadd.f32 %v531, %v570
    %v572 = vpop.f32.mrb[0].mxu0
    %v573 = vpop.f32.mrb[0].mxu0
    %v574 = vpop.f32.mrb[0].mxu0
    %575 = vdwg.mxu0
    %576 = vmatprep.subr.bf16.mxu0 0
    %577 = vmatpush1.bf16.msra.mxu0 %v402
    %578 = vmatprep.subr.bf16.mxu0 0
    %579 = vmatpush1.bf16.msra.mxu0 0
    %580 = vmatprep.subr.bf16.mxu0 0
    %581 = vmatpush1.bf16.msra.mxu0 0
    %582 = vmatprep.subr.bf16.mxu0 0
    %583 = vmatpush1.bf16.msra.mxu0 0
    %584 = vmatprep.subr.bf16.mxu0 0
    %585 = vmatpush1.bf16.msra.mxu0 0
    %586 = vmatprep.subr.bf16.mxu0 0
    %587 = vmatpush1.bf16.msra.mxu0 0
    %588 = vmatprep.subr.bf16.mxu0 0
    %589 = vmatpush1.bf16.msra.mxu0 0
    %590 = vmatprep.subr.bf16.mxu0 0
    %591 = vmatpush1.bf16.msra.mxu0 0
    %592 = vmatprep.subr.bf16.mxu0 0
    %593 = vmatpush1.bf16.msra.mxu0 0
    %594 = vmatprep.subr.bf16.mxu0 0
    %595 = vmatpush1.bf16.msra.mxu0 0
    %596 = vmatprep.subr.bf16.mxu0 0
    %597 = vmatpush1.bf16.msra.mxu0 0
    %598 = vmatprep.subr.bf16.mxu0 0
    %599 = vmatpush1.bf16.msra.mxu0 0
    %600 = vmatprep.subr.bf16.mxu0 0
    %601 = vmatpush1.bf16.msra.mxu0 0
    %602 = vmatprep.subr.bf16.mxu0 0
    %603 = vmatpush1.bf16.msra.mxu0 0
    %604 = vmatprep.subr.bf16.mxu0 0
    %605 = vmatpush1.bf16.msra.mxu0 0
    %606 = vmatprep.subr.bf16.mxu0 0
    %607 = vmatpush1.bf16.msra.mxu0 0
    %608 = vmatprep.mubr.bf16.mxu0 0
    %609 = vmatmul.mubr.bf16.gmra.mrb[0].mxu0 %v454
    %v610 = vpop.f32.mrb[0].mxu0
    %v611 = vadd.f32 %v571, %v610
    %v612 = vpop.f32.mrb[0].mxu0
    %v613 = vpop.f32.mrb[0].mxu0
    %v614 = vpop.f32.mrb[0].mxu0
    %615 = vdwg.mxu0
    %v616 = vld [vmem:[%s2] sm:$0x1]
    %v617 = vld [vmem:[%s2 + $0x1] sm:$0x1]
    %v618 = vld [vmem:[%s2 + $0x2] sm:$0x1]
    %v619 = vld [vmem:[%s2 + $0x3] sm:$0x1]
    %v620 = vld [vmem:[%s2 + $0x4] sm:$0x1]
    %s621 = sld [smem:[#allocation2]]
    %s622 = sld [smem:[#allocation2 + $0x1]]
    %vm623 = vcmask 64512
    %v624 = vsel %vm623, %v611, 0.0
    %v625 = vrot.slane %v624, 4
    %v626 = vadd.f32 %v624, %v625
    %v627 = vrot.slane %v626, 2
    %v628 = vadd.f32 %v626, %v627
    %v629 = vrot.slane %v628, 1
    %v630 = vadd.f32 %v628, %v629
    %v631 = vrcp.pop 8.0
    %v632 = vmul.f32 %v630, %v631
    %v633 = vsub.f32 %v611, %v632
    %v634 = vmul.f32 %v633, %v633
    %v635 = vsel %vm623, %v634, 0.0
    %v636 = vrot.slane %v635, 4
    %v637 = vadd.f32 %v635, %v636
    %v638 = vrot.slane %v637, 2
    %v639 = vadd.f32 %v637, %v638
    %v640 = vrot.slane %v639, 1
    %v641 = vadd.f32 %v639, %v640
    %v642 = vmul.f32 %v641, %v631
    %v643 = vadd.f32 %v642, 1e-05
    %v644 = vrsqrt.pop %v643
    %v645 = vmul.f32 %v633, %v644
    %v646 = vlaneseq
    %v647 = vshrl.u32 %v646, 7
    %v648 = vsub.s32 0, %v647
    %v649 = vrot.slane %v616, %v648
    %v650 = vmul.f32 %v645, %v649
    %v651 = vlaneseq
    %v652 = vshrl.u32 %v651, 7
    %v653 = vsub.s32 0, %v652
    %v654 = vrot.slane %v617, %v653
    %v655 = vadd.f32 %v650, %v654
    %v656 = vmul.f32 %v655, 0.01
    %v657 = vmax.f32 %v655, %v656
    %v658 = vlaneseq
    %v659 = vshrl.u32 %v658, 7
    %v660 = vsub.s32 0, %v659
    %v661 = vrot.slane %v618, %v660
    %v662 = vmul.f32 %v657, %v661
    %v663 = vsel %vm623, %v662, 0.0
    %664 = vadd.xlane.f32.xlu0 %v663
    %v665 = vpop.xlane.xlu0 %664
    %v666 = vrot.slane %v665, 4
    %v667 = vadd.f32 %v665, %v666
    %v668 = vrot.slane %v667, 2
    %v669 = vadd.f32 %v667, %v668
    %v670 = vrot.slane %v669, 1
    %v671 = vadd.f32 %v669, %v670
    %v672 = vmul.f32 %v671, %v631
    %v673 = vsub.f32 %v665, %v672
    %v674 = vmul.f32 %v673, %v673
    %v675 = vrot.slane %v674, 4
    %v676 = vadd.f32 %v674, %v675
    %v677 = vrot.slane %v676, 2
    %v678 = vadd.f32 %v676, %v677
    %v679 = vrot.slane %v678, 1
    %v680 = vadd.f32 %v678, %v679
    %v681 = vmul.f32 %v680, %v631
    %v682 = vadd.f32 %v681, 1e-05
    %v683 = vrsqrt.pop %v682
    %v684 = vmul.f32 %v673, %v683
    %v685 = vstv %s621
    %v686 = vmul.f32 %v684, %v685
    %v687 = vstv %s622
    %v688 = vadd.f32 %v686, %v687
    %v689 = vmul.f32 %v688, 0.01
    %v690 = vmax.f32 %v688, %v689
    %v691 = vlaneseq
    %v692 = vshrl.u32 %v691, 7
    %v693 = vsub.s32 0, %v692
    %v694 = vrot.slane %v619, %v693
    %v695 = vmul.f32 %v690, %v694
    %v696 = vlaneseq
    %v697 = vshrl.u32 %v696, 7
    %v698 = vsub.s32 0, %v697
    %v699 = vrot.slane %v620, %v698
    %v700 = vadd.f32 %v695, %v699
    %701 = vst [vmem:[#allocation5] sm:$0xff] %v700
    // Predicated region
    $region22: #{model_9_forward.1} parent=1 // pred_check
      _
    $region23: #{model_9_forward.1} parent=1 // pred_check_branch
      %703 = sbr.rel (0) target = $region25
    $region24: #{model_9_forward.1} parent=1 // pred_region
      %s705 = ssub.s32 128, 128
      %706 = vsyncadd [#allocation3], %s705
      %s708 = sshll.u32 [#allocation5], 4
      %s709 = int_to_ptr.vmem [resolvable:$true] %s708
      %711 = dma.vmem_to_hbm [thread:$0]  %s709, 128, %s4, [#allocation3]
    $region25: #{model_9_forward.1} parent=1 // pred_fallthru
      _
    // Predicated region
    $region26: #{model_9_forward.1} parent=1 // pred_check
      _
    $region27: #{model_9_forward.1} parent=1 // pred_check_branch
      %713 = sbr.rel (0) target = $region29
    $region28: #{model_9_forward.1} parent=1 // pred_region
      %714 = dma.done [#allocation3], 128
    $region29: #{model_9_forward.1} parent=1 // pred_fallthru
      _
    %715 = vsyncpa [#allocation3], 1
    %716 = vsyncpa [#allocation4], 1

</llo_original>
